<compile_context>
chip_gen: v5e
topology: v5e:2x2
jax: 0.10.0
libtpu: 0.0.40
codegen_flags: <defaults>
</compile_context>

<pallas_src>
import functools

import jax
import jax.numpy as jnp
from jax.experimental import pallas as pl
from jax.experimental.pallas import tpu as pltpu

# ---- problem sizes (small, consistent with the module) ----
N = 2          # batch
L = 16         # query sequence length
S = 16         # source (key/value) sequence length
C = 32         # d_model
H = 4          # nhead
D = C // H     # head dim

ATTN_EPS = 1e-6   # LinearAttention eps
LN_EPS = 1e-5     # nn.LayerNorm default eps


def _elu_plus_one(t):
    # elu(t) + 1  ==  t + 1 (t > 0)  else  exp(t)
    return jnp.where(t > 0, t + 1.0, jnp.exp(t))


def cross_transformer_kernel(
    x_ref, src_ref, wa_ref, wb_ref, ln_ref, mask2_ref, o_ref,
    *, nhead, head_dim, batch, q_len, src_len,
):
    c = nhead * head_dim
    x = x_ref[...]            # [B*L, C] f32
    src = src_ref[...]        # [B*S, C] f32
    x_bf = x.astype(jnp.bfloat16)
    src_bf = src.astype(jnp.bfloat16)

    w_a = wa_ref[...]         # [C, 4C]  bf16  = [wq | wk | wv | wm]
    w_b = wb_ref[...]         # [2C, 3C] bf16  = [w1 | w2]
    mask2 = mask2_ref[...]    # [C, 2C]  bf16  block-diagonal head mask, tiled twice

    # q projection and packed k|v projection (Linear, no bias) — bf16 MXU, f32 acc
    q = jnp.dot(x_bf, w_a[:, :c], preferred_element_type=jnp.float32)        # [B*L, C]
    kv = jnp.dot(src_bf, w_a[:, c:3 * c], preferred_element_type=jnp.float32)  # [B*S, 2C]

    # feature maps in f32 (VPU/EUP), rounded once to bf16 MXU operands
    qf_bf = _elu_plus_one(q).astype(jnp.bfloat16)                 # [B*L, C]
    kf_bf = _elu_plus_one(kv[:, :c]).astype(jnp.bfloat16)         # [B*S, C]
    # values packed with a ones block so K^T @ [V | 1] = [K^T V | Ksum broadcast]
    v = kv[:, c:]
    vext_bf = jnp.concatenate([v, jnp.ones_like(v)], axis=1).astype(jnp.bfloat16)  # [B*S, 2C]

    # Linear attention; only the contractions over S are per-batch (static unroll).
    # The values/v_length ... *v_length scaling cancels algebraically and is dropped.
    msg_parts = []
    for b in range(batch):
        Kb = kf_bf[b * src_len:(b + 1) * src_len, :]    # [S, C]   sublane slice
        Vb = vext_bf[b * src_len:(b + 1) * src_len, :]  # [S, 2C]
        Qb = qf_bf[b * q_len:(b + 1) * q_len, :]        # [L, C]

        # contraction over S without materializing K^T:  [C, 2C] = [K^T V | Ksum(bcast)]
        kv_ext = jax.lax.dot_general(
            Kb, Vb, dimension_numbers=(((0,), (0,)), ((), ())),
            preferred_element_type=jnp.float32)
        # zero the off-diagonal (cross-head) DxD blocks; mask is exact 0/1 in bf16
        rhs = kv_ext.astype(jnp.bfloat16) * mask2                 # [C, 2C]

        # single MXU push per batch: [numer | denom]
        out = jnp.dot(Qb, rhs, preferred_element_type=jnp.float32)  # [L, 2C]
        numer = out[:, :c]
        denom = out[:, c:]
        msg_parts.append(numer * pl.reciprocal(denom + ATTN_EPS, approx=True))  # EUP slot

    msg = jnp.concatenate(msg_parts, axis=0)                      # [B*L, C]

    # merge projection
    m = jnp.dot(msg.astype(jnp.bfloat16), w_a[:, 3 * c:],
                preferred_element_type=jnp.float32)               # [B*L, C]

    # LayerNorm 1 (f32)
    g1 = ln_ref[0:1, :]
    b1 = ln_ref[1:2, :]
    mu = jnp.mean(m, axis=-1, keepdims=True)
    var = jnp.mean((m - mu) ** 2, axis=-1, keepdims=True)
    m = (m - mu) * jax.lax.rsqrt(var + LN_EPS) * g1 + b1

    # MLP on cat([x, m], -1) with the packed [2C, 3C] weight blob
    cat = jnp.concatenate([x, m], axis=-1).astype(jnp.bfloat16)   # [B*L, 2C]
    h1 = jnp.dot(cat, w_b[:, :2 * c], preferred_element_type=jnp.float32)  # [B*L, 2C]
    h1 = jnp.maximum(h1, 0.0)
    m2 = jnp.dot(h1.astype(jnp.bfloat16), w_b[:, 2 * c:],
                 preferred_element_type=jnp.float32)              # [B*L, C]
    # nn.Dropout in the MLP is identity in eval mode (no op).

    # LayerNorm 2 (f32)
    g2 = ln_ref[2:3, :]
    b2 = ln_ref[3:4, :]
    mu2 = jnp.mean(m2, axis=-1, keepdims=True)
    var2 = jnp.mean((m2 - mu2) ** 2, axis=-1, keepdims=True)
    m2 = (m2 - mu2) * jax.lax.rsqrt(var2 + LN_EPS) * g2 + b2

    # residual
    o_ref[...] = x + m2


def prepare_params(params, nhead=H):
    """One-time packing / casting of the module parameters (do NOT run per forward)."""
    bf = jnp.bfloat16
    c = params["wq"].shape[0]
    head_dim = c // nhead
    # weight blobs (pre-transposed [in, out] so the kernel computes y = x @ W)
    w_a = jnp.concatenate(
        [params["wq"], params["wk"], params["wv"], params["wm"]], axis=1).astype(bf)  # [C, 4C]
    w_b = jnp.concatenate([params["w1"], params["w2"]], axis=1).astype(bf)             # [2C, 3C]
    # LayerNorm params packed into one f32 array
    ln = jnp.stack([params["g1"][0], params["b1"][0],
                    params["g2"][0], params["b2"][0]], axis=0)                         # [4, C]
    # block-diagonal head mask, tiled twice along lanes for the packed [KV | Ksum] RHS
    hidx = jnp.arange(c) // head_dim
    head_mask = (hidx[:, None] == hidx[None, :]).astype(jnp.float32)                   # [C, C]
    mask2 = jnp.tile(head_mask, (1, 2)).astype(bf)                                     # [C, 2C]
    return {"w_a": w_a, "w_b": w_b, "ln": ln, "mask2": mask2}


def cross_transformer_encoder(x, source, prepped, nhead=H):
    """x: [N, L, C], source: [N, S, C] -> [N, L, C]."""
    n, l, c = x.shape
    _, s, _ = source.shape
    head_dim = c // nhead

    # fold the batch into the row dimension (row-major reshape is a free view)
    x2 = x.reshape(n * l, c)
    src2 = source.reshape(n * s, c)

    kernel = functools.partial(
        cross_transformer_kernel, nhead=nhead, head_dim=head_dim,
        batch=n, q_len=l, src_len=s)

    full = lambda shape: pl.BlockSpec(shape, lambda i: (0, 0))

    flops = int(2 * (n * l * c * c              # q proj
                     + n * s * c * 2 * c        # packed k|v proj
                     + n * s * c * 2 * c        # per-batch K^T [V|1]
                     + n * l * c * 2 * c        # per-batch Q @ [KV|Wd]
                     + n * l * c * c            # merge
                     + n * l * 2 * c * 2 * c    # mlp1
                     + n * l * 2 * c * c))      # mlp2
    transcendentals = int(n * l * c + n * s * c + n * l * c + 2 * n * l)
    bytes_accessed = int(
        4 * (x2.size + src2.size + n * l * c + prepped["ln"].size)
        + 2 * (prepped["w_a"].size + prepped["w_b"].size + prepped["mask2"].size))

    out2 = pl.pallas_call(
        kernel,
        out_shape=jax.ShapeDtypeStruct((n * l, c), jnp.float32),
        grid_spec=pltpu.PrefetchScalarGridSpec(
            num_scalar_prefetch=0,
            grid=(1,),                      # whole problem in one invocation
            in_specs=[
                full((n * l, c)),           # x (folded batch)
                full((n * s, c)),           # source (folded batch)
                full((c, 4 * c)),           # [wq | wk | wv | wm] bf16
                full((2 * c, 3 * c)),       # [w1 | w2] bf16
                full((4, c)),               # [g1; b1; g2; b2] f32
                full((c, 2 * c)),           # packed head mask bf16
            ],
            out_specs=full((n * l, c)),
        ),
        compiler_params=pltpu.CompilerParams(
            dimension_semantics=("arbitrary",)),
        cost_estimate=pl.CostEstimate(
            flops=flops, transcendentals=transcendentals,
            bytes_accessed=bytes_accessed),
    )(x2, src2, prepped["w_a"], prepped["w_b"], prepped["ln"], prepped["mask2"])

    return out2.reshape(n, l, c)


# ---------------- pure-JAX f32 reference (mirrors the PyTorch forward) ----------------
def reference_forward(x, source, p):
    mm = lambda a, b: jnp.dot(a, b, precision="highest")
    n, l, c = x.shape
    s = source.shape[1]
    q = mm(x, p["wq"]).reshape(n, l, H, D)
    k = mm(source, p["wk"]).reshape(n, s, H, D)
    v = mm(source, p["wv"]).reshape(n, s, H, D)

    Q = jax.nn.elu(q) + 1.0
    K = jax.nn.elu(k) + 1.0
    Vn = v / s
    KV = jnp.einsum('nshd,nshv->nhdv', K, Vn, precision="highest")
    Z = 1.0 / (jnp.einsum('nlhd,nhd->nlh', Q, K.sum(axis=1),
                          precision="highest") + ATTN_EPS)
    msg = jnp.einsum('nlhd,nhdv,nlh->nlhv', Q, KV, Z, precision="highest") * s
    msg = mm(msg.reshape(n, l, c), p["wm"])

    mu = msg.mean(-1, keepdims=True)
    var = ((msg - mu) ** 2).mean(-1, keepdims=True)
    msg = (msg - mu) / jnp.sqrt(var + LN_EPS) * p["g1"][0] + p["b1"][0]

    cat = jnp.concatenate([x, msg], axis=-1)
    h1 = jnp.maximum(mm(cat, p["w1"]), 0.0)
    m2 = mm(h1, p["w2"])
    mu2 = m2.mean(-1, keepdims=True)
    var2 = ((m2 - mu2) ** 2).mean(-1, keepdims=True)
    m2 = (m2 - mu2) / jnp.sqrt(var2 + LN_EPS) * p["g2"][0] + p["b2"][0]
    return x + m2


if __name__ == "__main__":
    key = jax.random.PRNGKey(0)
    keys = jax.random.split(key, 10)

    scale = 0.1
    params = {
        "wq":  scale * jax.random.normal(keys[0], (C, C), jnp.float32),
        "wk":  scale * jax.random.normal(keys[1], (C, C), jnp.float32),
        "wv":  scale * jax.random.normal(keys[2], (C, C), jnp.float32),
        "wm":  scale * jax.random.normal(keys[3], (C, C), jnp.float32),
        "w1":  scale * jax.random.normal(keys[4], (2 * C, 2 * C), jnp.float32),
        "w2":  scale * jax.random.normal(keys[5], (2 * C, C), jnp.float32),
        "g1":  jnp.ones((1, C), jnp.float32),   # LayerNorm default init
        "b1":  jnp.zeros((1, C), jnp.float32),
        "g2":  jnp.ones((1, C), jnp.float32),
        "b2":  jnp.zeros((1, C), jnp.float32),
    }

    x = jax.random.normal(keys[7], (N, L, C), jnp.float32)
    source = jax.random.normal(keys[8], (N, S, C), jnp.float32)

    prepped = prepare_params(params)                 # one-time packing / bf16 casting
    prepped = jax.tree_util.tree_map(jax.block_until_ready, prepped)

    out = cross_transformer_encoder(x, source, prepped)
    out = jax.block_until_ready(out)

    ref = reference_forward(x, source, params)
    assert out.shape == (N, L, C)
    # Tolerance accounts for bf16 MXU operands (incl. the packed Ksum contraction) +
    # EUP approx reciprocal in the kernel vs. the full-f32 reference (all LayerNorm /
    # feature-map math is f32 in both).
    max_err = float(jnp.max(jnp.abs(out - ref)))
    assert jnp.allclose(out, ref, atol=4e-2, rtol=4e-2), max_err

    print("KERNEL_OK")
</pallas_src>

<mosaic_0001>
module attributes {stable_mosaic.version = 11 : i64} {
  func.func @cross_transformer_kernel(%arg0: i32, %arg1: memref<32x32xf32, #tpu.memory_space<vmem>>, %arg2: memref<32x32xf32, #tpu.memory_space<vmem>>, %arg3: memref<32x128xbf16, #tpu.memory_space<vmem>>, %arg4: memref<64x96xbf16, #tpu.memory_space<vmem>>, %arg5: memref<4x32xf32, #tpu.memory_space<vmem>>, %arg6: memref<32x64xbf16, #tpu.memory_space<vmem>>, %arg7: memref<32x32xf32, #tpu.memory_space<vmem>>) attributes {dimension_semantics = [#tpu.dimension_semantics<arbitrary>], iteration_bounds = array<i64: 1>, scalar_prefetch = 0 : i64, scratch_operands = 0 : i64, tpu.core_type = #tpu.core_type<tc>, window_params = [{pipeline_mode = #tpu.pipeline_mode<synchronous>, transform_indices = @transform_0, window_bounds = array<i64: 32, 32>}, {pipeline_mode = #tpu.pipeline_mode<synchronous>, transform_indices = @transform_1, window_bounds = array<i64: 32, 32>}, {pipeline_mode = #tpu.pipeline_mode<synchronous>, transform_indices = @transform_2, window_bounds = array<i64: 32, 128>}, {pipeline_mode = #tpu.pipeline_mode<synchronous>, transform_indices = @transform_3, window_bounds = array<i64: 64, 96>}, {pipeline_mode = #tpu.pipeline_mode<synchronous>, transform_indices = @transform_4, window_bounds = array<i64: 4, 32>}, {pipeline_mode = #tpu.pipeline_mode<synchronous>, transform_indices = @transform_5, window_bounds = array<i64: 32, 64>}, {pipeline_mode = #tpu.pipeline_mode<synchronous>, transform_indices = @transform_6, window_bounds = array<i64: 32, 32>}]} {
    %c0 = arith.constant 0 : index
    %c0_0 = arith.constant 0 : index
    %0 = vector.load %arg1[%c0, %c0_0] : memref<32x32xf32, #tpu.memory_space<vmem>>, vector<32x32xf32>
    %c0_1 = arith.constant 0 : index
    %c0_2 = arith.constant 0 : index
    %1 = vector.load %arg2[%c0_1, %c0_2] : memref<32x32xf32, #tpu.memory_space<vmem>>, vector<32x32xf32>
    %2 = arith.truncf %0 : vector<32x32xf32> to vector<32x32xbf16>
    %3 = arith.truncf %1 : vector<32x32xf32> to vector<32x32xbf16>
    %c0_3 = arith.constant 0 : index
    %c0_4 = arith.constant 0 : index
    %4 = vector.load %arg3[%c0_3, %c0_4] : memref<32x128xbf16, #tpu.memory_space<vmem>>, vector<32x128xbf16>
    %c0_5 = arith.constant 0 : index
    %c0_6 = arith.constant 0 : index
    %5 = vector.load %arg4[%c0_5, %c0_6] : memref<64x96xbf16, #tpu.memory_space<vmem>>, vector<64x96xbf16>
    %c0_7 = arith.constant 0 : index
    %c0_8 = arith.constant 0 : index
    %6 = vector.load %arg6[%c0_7, %c0_8] : memref<32x64xbf16, #tpu.memory_space<vmem>>, vector<32x64xbf16>
    %7 = vector.extract_strided_slice %4 {offsets = [0, 0], sizes = [32, 32], strides = [1, 1]} : vector<32x128xbf16> to vector<32x32xbf16>
    %cst = arith.constant dense<0.000000e+00> : vector<32x32xf32>
    %8 = tpu.matmul %2, %7, %cst {dimension_numbers = #tpu.dot_dimension_numbers<[1], [0], [0], [1], [0, 0, 1, 1], [], []>} : vector<32x32xbf16>, vector<32x32xbf16>, vector<32x32xf32> -> vector<32x32xf32>
    %9 = vector.extract_strided_slice %4 {offsets = [0, 32], sizes = [32, 64], strides = [1, 1]} : vector<32x128xbf16> to vector<32x64xbf16>
    %cst_9 = arith.constant dense<0.000000e+00> : vector<32x64xf32>
    %10 = tpu.matmul %3, %9, %cst_9 {dimension_numbers = #tpu.dot_dimension_numbers<[1], [0], [0], [1], [0, 0, 1, 1], [], []>} : vector<32x32xbf16>, vector<32x64xbf16>, vector<32x64xf32> -> vector<32x64xf32>
    %cst_10 = arith.constant 0.000000e+00 : f32
    %11 = vector.broadcast %cst_10 : f32 to vector<32x32xf32>
    %12 = arith.cmpf ogt, %8, %11 : vector<32x32xf32>
    %cst_11 = arith.constant 1.000000e+00 : f32
    %13 = vector.broadcast %cst_11 : f32 to vector<32x32xf32>
    %14 = arith.addf %8, %13 : vector<32x32xf32>
    %15 = math.exp %8 : vector<32x32xf32>
    %16 = arith.select %12, %14, %15 : vector<32x32xi1>, vector<32x32xf32>
    %17 = arith.truncf %16 : vector<32x32xf32> to vector<32x32xbf16>
    %18 = vector.extract_strided_slice %10 {offsets = [0, 0], sizes = [32, 32], strides = [1, 1]} : vector<32x64xf32> to vector<32x32xf32>
    %cst_12 = arith.constant 0.000000e+00 : f32
    %19 = vector.broadcast %cst_12 : f32 to vector<32x32xf32>
    %20 = arith.cmpf ogt, %18, %19 : vector<32x32xf32>
    %cst_13 = arith.constant 1.000000e+00 : f32
    %21 = vector.broadcast %cst_13 : f32 to vector<32x32xf32>
    %22 = arith.addf %18, %21 : vector<32x32xf32>
    %23 = math.exp %18 : vector<32x32xf32>
    %24 = arith.select %20, %22, %23 : vector<32x32xi1>, vector<32x32xf32>
    %25 = arith.truncf %24 : vector<32x32xf32> to vector<32x32xbf16>
    %26 = vector.extract_strided_slice %10 {offsets = [0, 32], sizes = [32, 32], strides = [1, 1]} : vector<32x64xf32> to vector<32x32xf32>
    %cst_14 = arith.constant 1.000000e+00 : f32
    %27 = vector.broadcast %cst_14 : f32 to vector<32x32xf32>
    %28 = tpu.concatenate %26, %27 in 1 : vector<32x32xf32>, vector<32x32xf32> -> vector<32x64xf32>
    %29 = arith.truncf %28 : vector<32x64xf32> to vector<32x64xbf16>
    %30 = vector.extract_strided_slice %25 {offsets = [0, 0], sizes = [16, 32], strides = [1, 1]} : vector<32x32xbf16> to vector<16x32xbf16>
    %31 = vector.extract_strided_slice %29 {offsets = [0, 0], sizes = [16, 64], strides = [1, 1]} : vector<32x64xbf16> to vector<16x64xbf16>
    %32 = vector.extract_strided_slice %17 {offsets = [0, 0], sizes = [16, 32], strides = [1, 1]} : vector<32x32xbf16> to vector<16x32xbf16>
    %cst_15 = arith.constant dense<0.000000e+00> : vector<32x64xf32>
    %33 = tpu.matmul %30, %31, %cst_15 {dimension_numbers = #tpu.dot_dimension_numbers<[0], [0], [1], [1], [0, 1, 1, 1], [], []>} : vector<16x32xbf16>, vector<16x64xbf16>, vector<32x64xf32> -> vector<32x64xf32>
    %34 = arith.truncf %33 : vector<32x64xf32> to vector<32x64xbf16>
    %35 = arith.mulf %34, %6 : vector<32x64xbf16>
    %cst_16 = arith.constant dense<0.000000e+00> : vector<16x64xf32>
    %36 = tpu.matmul %32, %35, %cst_16 {dimension_numbers = #tpu.dot_dimension_numbers<[1], [0], [0], [1], [0, 0, 1, 1], [], []>} : vector<16x32xbf16>, vector<32x64xbf16>, vector<16x64xf32> -> vector<16x64xf32>
    %37 = vector.extract_strided_slice %36 {offsets = [0, 0], sizes = [16, 32], strides = [1, 1]} : vector<16x64xf32> to vector<16x32xf32>
    %38 = vector.extract_strided_slice %36 {offsets = [0, 32], sizes = [16, 32], strides = [1, 1]} : vector<16x64xf32> to vector<16x32xf32>
    %cst_17 = arith.constant 9.99999997E-7 : f32
    %39 = vector.broadcast %cst_17 : f32 to vector<16x32xf32>
    %40 = arith.addf %38, %39 : vector<16x32xf32>
    %41 = tpu.reciprocal %40 {approx = true} : vector<16x32xf32> -> vector<16x32xf32>
    %42 = arith.mulf %37, %41 : vector<16x32xf32>
    %43 = vector.extract_strided_slice %25 {offsets = [16, 0], sizes = [16, 32], strides = [1, 1]} : vector<32x32xbf16> to vector<16x32xbf16>
    %44 = vector.extract_strided_slice %29 {offsets = [16, 0], sizes = [16, 64], strides = [1, 1]} : vector<32x64xbf16> to vector<16x64xbf16>
    %45 = vector.extract_strided_slice %17 {offsets = [16, 0], sizes = [16, 32], strides = [1, 1]} : vector<32x32xbf16> to vector<16x32xbf16>
    %cst_18 = arith.constant dense<0.000000e+00> : vector<32x64xf32>
    %46 = tpu.matmul %43, %44, %cst_18 {dimension_numbers = #tpu.dot_dimension_numbers<[0], [0], [1], [1], [0, 1, 1, 1], [], []>} : vector<16x32xbf16>, vector<16x64xbf16>, vector<32x64xf32> -> vector<32x64xf32>
    %47 = arith.truncf %46 : vector<32x64xf32> to vector<32x64xbf16>
    %48 = arith.mulf %47, %6 : vector<32x64xbf16>
    %cst_19 = arith.constant dense<0.000000e+00> : vector<16x64xf32>
    %49 = tpu.matmul %45, %48, %cst_19 {dimension_numbers = #tpu.dot_dimension_numbers<[1], [0], [0], [1], [0, 0, 1, 1], [], []>} : vector<16x32xbf16>, vector<32x64xbf16>, vector<16x64xf32> -> vector<16x64xf32>
    %50 = vector.extract_strided_slice %49 {offsets = [0, 0], sizes = [16, 32], strides = [1, 1]} : vector<16x64xf32> to vector<16x32xf32>
    %51 = vector.extract_strided_slice %49 {offsets = [0, 32], sizes = [16, 32], strides = [1, 1]} : vector<16x64xf32> to vector<16x32xf32>
    %cst_20 = arith.constant 9.99999997E-7 : f32
    %52 = vector.broadcast %cst_20 : f32 to vector<16x32xf32>
    %53 = arith.addf %51, %52 : vector<16x32xf32>
    %54 = tpu.reciprocal %53 {approx = true} : vector<16x32xf32> -> vector<16x32xf32>
    %55 = arith.mulf %50, %54 : vector<16x32xf32>
    %56 = tpu.concatenate %42, %55 in 0 : vector<16x32xf32>, vector<16x32xf32> -> vector<32x32xf32>
    %57 = arith.truncf %56 : vector<32x32xf32> to vector<32x32xbf16>
    %58 = vector.extract_strided_slice %4 {offsets = [0, 96], sizes = [32, 32], strides = [1, 1]} : vector<32x128xbf16> to vector<32x32xbf16>
    %cst_21 = arith.constant dense<0.000000e+00> : vector<32x32xf32>
    %59 = tpu.matmul %57, %58, %cst_21 {dimension_numbers = #tpu.dot_dimension_numbers<[1], [0], [0], [1], [0, 0, 1, 1], [], []>} : vector<32x32xbf16>, vector<32x32xbf16>, vector<32x32xf32> -> vector<32x32xf32>
    %c0_22 = arith.constant 0 : index
    %c0_23 = arith.constant 0 : index
    %60 = vector.load %arg5[%c0_22, %c0_23] : memref<4x32xf32, #tpu.memory_space<vmem>>, vector<1x32xf32>
    %c1 = arith.constant 1 : index
    %c0_24 = arith.constant 0 : index
    %61 = vector.load %arg5[%c1, %c0_24] : memref<4x32xf32, #tpu.memory_space<vmem>>, vector<1x32xf32>
    %cst_25 = arith.constant dense<0.000000e+00> : vector<32xf32>
    %62 = vector.multi_reduction <add>, %59, %cst_25 [1] : vector<32x32xf32> to vector<32xf32>
    %63 = vector.shape_cast %62 : vector<32xf32> to vector<32x1xf32>
    %cst_26 = arith.constant 3.200000e+01 : f32
    %64 = vector.broadcast %cst_26 : f32 to vector<32x1xf32>
    %65 = arith.divf %63, %64 : vector<32x1xf32>
    %66 = vector.broadcast %65 : vector<32x1xf32> to vector<32x32xf32>
    %67 = arith.subf %59, %66 : vector<32x32xf32>
    %68 = arith.mulf %67, %67 : vector<32x32xf32>
    %cst_27 = arith.constant dense<0.000000e+00> : vector<32xf32>
    %69 = vector.multi_reduction <add>, %68, %cst_27 [1] : vector<32x32xf32> to vector<32xf32>
    %70 = vector.shape_cast %69 : vector<32xf32> to vector<32x1xf32>
    %cst_28 = arith.constant 3.200000e+01 : f32
    %71 = vector.broadcast %cst_28 : f32 to vector<32x1xf32>
    %72 = arith.divf %70, %71 : vector<32x1xf32>
    %73 = vector.broadcast %65 : vector<32x1xf32> to vector<32x32xf32>
    %74 = arith.subf %59, %73 : vector<32x32xf32>
    %cst_29 = arith.constant 9.99999974E-6 : f32
    %75 = vector.broadcast %cst_29 : f32 to vector<32x1xf32>
    %76 = arith.addf %72, %75 : vector<32x1xf32>
    %77 = math.rsqrt %76 : vector<32x1xf32>
    %78 = vector.broadcast %77 : vector<32x1xf32> to vector<32x32xf32>
    %79 = arith.mulf %74, %78 : vector<32x32xf32>
    %80 = vector.broadcast %60 : vector<1x32xf32> to vector<32x32xf32>
    %81 = arith.mulf %79, %80 : vector<32x32xf32>
    %82 = vector.broadcast %61 : vector<1x32xf32> to vector<32x32xf32>
    %83 = arith.addf %81, %82 : vector<32x32xf32>
    %84 = tpu.concatenate %0, %83 in 1 : vector<32x32xf32>, vector<32x32xf32> -> vector<32x64xf32>
    %85 = arith.truncf %84 : vector<32x64xf32> to vector<32x64xbf16>
    %86 = vector.extract_strided_slice %5 {offsets = [0, 0], sizes = [64, 64], strides = [1, 1]} : vector<64x96xbf16> to vector<64x64xbf16>
    %cst_30 = arith.constant dense<0.000000e+00> : vector<32x64xf32>
    %87 = tpu.matmul %85, %86, %cst_30 {dimension_numbers = #tpu.dot_dimension_numbers<[1], [0], [0], [1], [0, 0, 1, 1], [], []>} : vector<32x64xbf16>, vector<64x64xbf16>, vector<32x64xf32> -> vector<32x64xf32>
    %cst_31 = arith.constant 0.000000e+00 : f32
    %88 = vector.broadcast %cst_31 : f32 to vector<32x64xf32>
    %89 = arith.maximumf %87, %88 : vector<32x64xf32>
    %90 = arith.truncf %89 : vector<32x64xf32> to vector<32x64xbf16>
    %91 = vector.extract_strided_slice %5 {offsets = [0, 64], sizes = [64, 32], strides = [1, 1]} : vector<64x96xbf16> to vector<64x32xbf16>
    %cst_32 = arith.constant dense<0.000000e+00> : vector<32x32xf32>
    %92 = tpu.matmul %90, %91, %cst_32 {dimension_numbers = #tpu.dot_dimension_numbers<[1], [0], [0], [1], [0, 0, 1, 1], [], []>} : vector<32x64xbf16>, vector<64x32xbf16>, vector<32x32xf32> -> vector<32x32xf32>
    %c2 = arith.constant 2 : index
    %c0_33 = arith.constant 0 : index
    %93 = vector.load %arg5[%c2, %c0_33] : memref<4x32xf32, #tpu.memory_space<vmem>>, vector<1x32xf32>
    %c3 = arith.constant 3 : index
    %c0_34 = arith.constant 0 : index
    %94 = vector.load %arg5[%c3, %c0_34] : memref<4x32xf32, #tpu.memory_space<vmem>>, vector<1x32xf32>
    %cst_35 = arith.constant dense<0.000000e+00> : vector<32xf32>
    %95 = vector.multi_reduction <add>, %92, %cst_35 [1] : vector<32x32xf32> to vector<32xf32>
    %96 = vector.shape_cast %95 : vector<32xf32> to vector<32x1xf32>
    %cst_36 = arith.constant 3.200000e+01 : f32
    %97 = vector.broadcast %cst_36 : f32 to vector<32x1xf32>
    %98 = arith.divf %96, %97 : vector<32x1xf32>
    %99 = vector.broadcast %98 : vector<32x1xf32> to vector<32x32xf32>
    %100 = arith.subf %92, %99 : vector<32x32xf32>
    %101 = arith.mulf %100, %100 : vector<32x32xf32>
    %cst_37 = arith.constant dense<0.000000e+00> : vector<32xf32>
    %102 = vector.multi_reduction <add>, %101, %cst_37 [1] : vector<32x32xf32> to vector<32xf32>
    %103 = vector.shape_cast %102 : vector<32xf32> to vector<32x1xf32>
    %cst_38 = arith.constant 3.200000e+01 : f32
    %104 = vector.broadcast %cst_38 : f32 to vector<32x1xf32>
    %105 = arith.divf %103, %104 : vector<32x1xf32>
    %106 = vector.broadcast %98 : vector<32x1xf32> to vector<32x32xf32>
    %107 = arith.subf %92, %106 : vector<32x32xf32>
    %cst_39 = arith.constant 9.99999974E-6 : f32
    %108 = vector.broadcast %cst_39 : f32 to vector<32x1xf32>
    %109 = arith.addf %105, %108 : vector<32x1xf32>
    %110 = math.rsqrt %109 : vector<32x1xf32>
    %111 = vector.broadcast %110 : vector<32x1xf32> to vector<32x32xf32>
    %112 = arith.mulf %107, %111 : vector<32x32xf32>
    %113 = vector.broadcast %93 : vector<1x32xf32> to vector<32x32xf32>
    %114 = arith.mulf %112, %113 : vector<32x32xf32>
    %115 = vector.broadcast %94 : vector<1x32xf32> to vector<32x32xf32>
    %116 = arith.addf %114, %115 : vector<32x32xf32>
    %117 = arith.addf %0, %116 : vector<32x32xf32>
    %c0_40 = arith.constant 0 : index
    %c0_41 = arith.constant 0 : index
    %118 = vector.load %arg7[%c0_40, %c0_41] : memref<32x32xf32, #tpu.memory_space<vmem>>, vector<32x32xf32>
    tpu.vector_store %arg7[%c0_40, %c0_41], %117 {strides = array<i32>} : memref<32x32xf32, #tpu.memory_space<vmem>>, vector<32x32xf32>,
    return
  }
  func.func @transform_0(%arg0: i32) -> (i32, i32) {
    %c0_i32 = arith.constant 0 : i32
    %c0_i32_0 = arith.constant 0 : i32
    %c0_i32_1 = arith.constant 0 : i32
    return %c0_i32, %c0_i32_0 : i32, i32
  }
  func.func @transform_1(%arg0: i32) -> (i32, i32) {
    %c0_i32 = arith.constant 0 : i32
    %c0_i32_0 = arith.constant 0 : i32
    %c0_i32_1 = arith.constant 0 : i32
    return %c0_i32, %c0_i32_0 : i32, i32
  }
  func.func @transform_2(%arg0: i32) -> (i32, i32) {
    %c0_i32 = arith.constant 0 : i32
    %c0_i32_0 = arith.constant 0 : i32
    %c0_i32_1 = arith.constant 0 : i32
    return %c0_i32, %c0_i32_0 : i32, i32
  }
  func.func @transform_3(%arg0: i32) -> (i32, i32) {
    %c0_i32 = arith.constant 0 : i32
    %c0_i32_0 = arith.constant 0 : i32
    %c0_i32_1 = arith.constant 0 : i32
    return %c0_i32, %c0_i32_0 : i32, i32
  }
  func.func @transform_4(%arg0: i32) -> (i32, i32) {
    %c0_i32 = arith.constant 0 : i32
    %c0_i32_0 = arith.constant 0 : i32
    %c0_i32_1 = arith.constant 0 : i32
    return %c0_i32, %c0_i32_0 : i32, i32
  }
  func.func @transform_5(%arg0: i32) -> (i32, i32) {
    %c0_i32 = arith.constant 0 : i32
    %c0_i32_0 = arith.constant 0 : i32
    %c0_i32_1 = arith.constant 0 : i32
    return %c0_i32, %c0_i32_0 : i32, i32
  }
  func.func @transform_6(%arg0: i32) -> (i32, i32) {
    %c0_i32 = arith.constant 0 : i32
    %c0_i32_0 = arith.constant 0 : i32
    %c0_i32_1 = arith.constant 0 : i32
    return %c0_i32, %c0_i32_0 : i32, i32
  }
}

</mosaic_0001>

<llo_original>
// kernel: tpu_custom_call.1
$region0: #{tpu_custom_call.1}
  #allocation0 [shape = 'u32[]', space=smem, size = 0x4, offset = 0x4, fixed_abs, tag = 'smem constant byte address 0x4 - core index']
  #allocation1 [shape = 'u32[72,128]{1,0:T(1,128)}', space=vmem, size = 0x9000, scoped, tag = 'internal scratch']
  %s0 = inlined_call_operand.hbm [shape: f32[32,32], index: 0, kind: input, shape index: {}]
  %s1 = inlined_call_operand.hbm [shape: f32[32,32], index: 1, kind: input, shape index: {}]
  %s2 = inlined_call_operand.hbm [shape: bf16[32,128], index: 2, kind: input, shape index: {}]
  %s3 = inlined_call_operand.hbm [shape: bf16[64,96], index: 3, kind: input, shape index: {}]
  %s4 = inlined_call_operand.hbm [shape: f32[4,32], index: 4, kind: input, shape index: {}]
  %s5 = inlined_call_operand.hbm [shape: bf16[32,64], index: 5, kind: input, shape index: {}]
  %s6 = inlined_call_operand.hbm [shape: f32[32,32], index: 6, kind: output, shape index: {}]
  %s7 = sld [smem:[#allocation0]]
  $region58: #{tpu_custom_call.1} parent=0
    _
  %s9 = ssub.s32 1, %s7
  %s10 = scalar_select 0, %s9, %s7
  $region1: #{tpu_custom_call.1} parent=0
    #allocation2 [shape = 'u8[16384]{0}', space=vmem, size = 0x4000, scoped, tag = 'input window, operand 0, single buffered']
    #allocation3 [shape = 's32[1]{0}', space=sflag, size = 0x4, scoped, tag = 'scoped memory for tpu_custom_call.1']
    #allocation4 [shape = 's32[1]{0}', space=sflag, size = 0x4, scoped, tag = 'scoped memory for tpu_custom_call.1']
    #allocation5 [shape = 'u8[16384]{0}', space=vmem, size = 0x4000, scoped, tag = 'input window, operand 1, single buffered']
    #allocation6 [shape = 's32[1]{0}', space=sflag, size = 0x4, scoped, tag = 'scoped memory for tpu_custom_call.1']
    #allocation7 [shape = 'u8[8192]{0}', space=vmem, size = 0x2000, scoped, tag = 'input window, operand 2, single buffered']
    #allocation8 [shape = 'u8[16384]{0}', space=vmem, size = 0x4000, scoped, tag = 'input window, operand 3, single buffered']
    #allocation9 [shape = 's32[1]{0}', space=sflag, size = 0x4, scoped, tag = 'scoped memory for tpu_custom_call.1']
    #allocation10 [shape = 'u8[2048]{0}', space=vmem, size = 0x800, scoped, tag = 'input window, operand 4, single buffered']
    #allocation11 [shape = 'u8[8192]{0}', space=vmem, size = 0x2000, scoped, tag = 'input window, operand 5, single buffered']
    #allocation12 [shape = 's32[1]{0}', space=sflag, size = 0x4, scoped, tag = 'scoped memory for tpu_custom_call.1']
    #allocation13 [shape = 'u8[16384]{0}', space=vmem, size = 0x4000, scoped, tag = 'output window, operand 0, single buffered']
    %11 = vsyncpa [#allocation3], 0
    %12 = vsyncpa [#allocation6], 0
    %13 = vsyncpa [#allocation9], 0
    %14 = vsyncpa [#allocation12], 0
    %15 = vsyncpa [#allocation4], 0
    // Predicated region
    $region2: #{tpu_custom_call.1} parent=1 // pred_check
      _
    $region3: #{tpu_custom_call.1} parent=1 // pred_check_branch
      %17 = sbr.rel (0) target = $region5
    $region4: #{tpu_custom_call.1} parent=1 // pred_region
      %19 = vsyncadd [#allocation3], 0
      %s20 = sshll.u32 %s0, 4
      %s21 = int_to_ptr.hbm [resolvable:$true] %s20
      %s22 = sshll.u32 [#allocation2], 4
      %s23 = int_to_ptr.vmem [resolvable:$true] %s22
      %28 = dma.hbm_to_vmem [thread:$0]  %s21, 512, %s23, [#allocation3], 128, 128, 8
    $region5: #{tpu_custom_call.1} parent=1 // pred_fallthru
      _
    // Predicated region
    $region6: #{tpu_custom_call.1} parent=1 // pred_check
      _
    $region7: #{tpu_custom_call.1} parent=1 // pred_check_branch
      %30 = sbr.rel (0) target = $region9
    $region8: #{tpu_custom_call.1} parent=1 // pred_region
      %32 = vsyncadd [#allocation6], 0
      %s33 = sshll.u32 %s1, 4
      %s34 = int_to_ptr.hbm [resolvable:$true] %s33
      %s35 = sshll.u32 [#allocation5], 4
      %s36 = int_to_ptr.vmem [resolvable:$true] %s35
      %41 = dma.hbm_to_vmem [thread:$0]  %s34, 512, %s36, [#allocation6], 128, 128, 8
    $region9: #{tpu_custom_call.1} parent=1 // pred_fallthru
      _
    // Predicated region
    $region10: #{tpu_custom_call.1} parent=1 // pred_check
      _
    $region11: #{tpu_custom_call.1} parent=1 // pred_check_branch
      %43 = sbr.rel (0) target = $region13
    $region12: #{tpu_custom_call.1} parent=1 // pred_region
      %45 = vsyncadd [#allocation6], 0
      %s46 = sshll.u32 %s2, 4
      %s47 = int_to_ptr.hbm [resolvable:$true] %s46
      %s48 = sshll.u32 [#allocation7], 4
      %s49 = int_to_ptr.vmem [resolvable:$true] %s48
      %54 = dma.hbm_to_vmem [thread:$0]  %s47, 256, %s49, [#allocation6], 64, 64, 4
    $region13: #{tpu_custom_call.1} parent=1 // pred_fallthru
      _
    // Predicated region
    $region14: #{tpu_custom_call.1} parent=1 // pred_check
      _
    $region15: #{tpu_custom_call.1} parent=1 // pred_check_branch
      %56 = sbr.rel (0) target = $region17
    $region16: #{tpu_custom_call.1} parent=1 // pred_region
      %58 = vsyncadd [#allocation9], 0
      %s59 = sshll.u32 %s3, 4
      %s60 = int_to_ptr.hbm [resolvable:$true] %s59
      %s61 = sshll.u32 [#allocation8], 4
      %s62 = int_to_ptr.vmem [resolvable:$true] %s61
      %67 = dma.hbm_to_vmem [thread:$0]  %s60, 512, %s62, [#allocation9], 64, 64, 4
    $region17: #{tpu_custom_call.1} parent=1 // pred_fallthru
      _
    // Predicated region
    $region18: #{tpu_custom_call.1} parent=1 // pred_check
      _
    $region19: #{tpu_custom_call.1} parent=1 // pred_check_branch
      %69 = sbr.rel (0) target = $region21
    $region20: #{tpu_custom_call.1} parent=1 // pred_region
      %71 = vsyncadd [#allocation9], 0
      %s73 = sshll.u32 %s4, 4
      %s74 = int_to_ptr.hbm [resolvable:$true] %s73
      %s75 = sshll.u32 [#allocation10], 4
      %s76 = int_to_ptr.vmem [resolvable:$true] %s75
      %78 = dma.hbm_to_vmem [thread:$0]  %s74, 64, %s76, [#allocation9]
    $region21: #{tpu_custom_call.1} parent=1 // pred_fallthru
      _
    // Predicated region
    $region22: #{tpu_custom_call.1} parent=1 // pred_check
      _
    $region23: #{tpu_custom_call.1} parent=1 // pred_check_branch
      %80 = sbr.rel (0) target = $region25
    $region24: #{tpu_custom_call.1} parent=1 // pred_region
      %82 = vsyncadd [#allocation12], 0
      %s83 = sshll.u32 %s5, 4
      %s84 = int_to_ptr.hbm [resolvable:$true] %s83
      %s85 = sshll.u32 [#allocation11], 4
      %s86 = int_to_ptr.vmem [resolvable:$true] %s85
      %91 = dma.hbm_to_vmem [thread:$0]  %s84, 256, %s86, [#allocation12], 64, 64, 4
    $region25: #{tpu_custom_call.1} parent=1 // pred_fallthru
      _
    // Predicated region
    $region26: #{tpu_custom_call.1} parent=1 // pred_check
      _
    $region27: #{tpu_custom_call.1} parent=1 // pred_check_branch
      %93 = sbr.rel (0) target = $region29
    $region28: #{tpu_custom_call.1} parent=1 // pred_region
      %95 = dma.done [#allocation3], 512
    $region29: #{tpu_custom_call.1} parent=1 // pred_fallthru
      _
    // Predicated region
    $region30: #{tpu_custom_call.1} parent=1 // pred_check
      _
    $region31: #{tpu_custom_call.1} parent=1 // pred_check_branch
      %97 = sbr.rel (0) target = $region33
    $region32: #{tpu_custom_call.1} parent=1 // pred_region
      %99 = dma.done [#allocation6], 512
    $region33: #{tpu_custom_call.1} parent=1 // pred_fallthru
      _
    // Predicated region
    $region34: #{tpu_custom_call.1} parent=1 // pred_check
      _
    $region35: #{tpu_custom_call.1} parent=1 // pred_check_branch
      %101 = sbr.rel (0) target = $region37
    $region36: #{tpu_custom_call.1} parent=1 // pred_region
      %103 = dma.done [#allocation6], 256
    $region37: #{tpu_custom_call.1} parent=1 // pred_fallthru
      _
    // Predicated region
    $region38: #{tpu_custom_call.1} parent=1 // pred_check
      _
    $region39: #{tpu_custom_call.1} parent=1 // pred_check_branch
      %105 = sbr.rel (0) target = $region41
    $region40: #{tpu_custom_call.1} parent=1 // pred_region
      %107 = dma.done [#allocation9], 512
    $region41: #{tpu_custom_call.1} parent=1 // pred_fallthru
      _
    // Predicated region
    $region42: #{tpu_custom_call.1} parent=1 // pred_check
      _
    $region43: #{tpu_custom_call.1} parent=1 // pred_check_branch
      %109 = sbr.rel (0) target = $region45
    $region44: #{tpu_custom_call.1} parent=1 // pred_region
      %111 = dma.done [#allocation9], 64
    $region45: #{tpu_custom_call.1} parent=1 // pred_fallthru
      _
    // Predicated region
    $region46: #{tpu_custom_call.1} parent=1 // pred_check
      _
    $region47: #{tpu_custom_call.1} parent=1 // pred_check_branch
      %113 = sbr.rel (0) target = $region49
    $region48: #{tpu_custom_call.1} parent=1 // pred_region
      %115 = dma.done [#allocation12], 256
    $region49: #{tpu_custom_call.1} parent=1 // pred_fallthru
      _
    %v117 = vld [vmem:[#allocation2] sm:$0xff]
    %v118 = vld [vmem:[#allocation2 + $0x8] sm:$0xff]
    %v119 = vld [vmem:[#allocation2 + $0x10] sm:$0xff]
    %v120 = vld [vmem:[#allocation2 + $0x18] sm:$0xff]
    %v121 = vld [vmem:[#allocation5] sm:$0xff]
    %v122 = vld [vmem:[#allocation5 + $0x8] sm:$0xff]
    %v123 = vld [vmem:[#allocation5 + $0x10] sm:$0xff]
    %v124 = vld [vmem:[#allocation5 + $0x18] sm:$0xff]
    %v125 = vpack.c.bf16 %v118, %v117
    %v126 = vpack.c.bf16 %v120, %v119
    %v127 = vpack.c.bf16 %v122, %v121
    %v128 = vpack.c.bf16 %v124, %v123
    %v129 = vld [vmem:[#allocation7] sm:$0xf]
    %v130 = vld [vmem:[#allocation7 + $0x4] sm:$0xf]
    %v131 = vld [vmem:[#allocation7 + $0x8] sm:$0xf]
    %v132 = vld [vmem:[#allocation7 + $0xc] sm:$0xf]
    %v133 = vld [vmem:[#allocation8] sm:$0xf]
    %v134 = vld [vmem:[#allocation8 + $0x4] sm:$0xf]
    %v135 = vld [vmem:[#allocation8 + $0x8] sm:$0xf]
    %v136 = vld [vmem:[#allocation8 + $0xc] sm:$0xf]
    %v137 = vld [vmem:[#allocation8 + $0x10] sm:$0xf]
    %v138 = vld [vmem:[#allocation8 + $0x14] sm:$0xf]
    %v139 = vld [vmem:[#allocation8 + $0x18] sm:$0xf]
    %v140 = vld [vmem:[#allocation8 + $0x1c] sm:$0xf]
    %v141 = vld [vmem:[#allocation11] sm:$0xf]
    %v142 = vld [vmem:[#allocation11 + $0x4] sm:$0xf]
    %v143 = vld [vmem:[#allocation11 + $0x8] sm:$0xf]
    %v144 = vld [vmem:[#allocation11 + $0xc] sm:$0xf]
    %v149 = vunpack.c.l.b16 %v129
    %v150 = vunpack.c.l.b16 %v130
    %v151 = vunpack.c.l.b16 %v131
    %v152 = vunpack.c.l.b16 %v132
    %v153 = vpack.c.b16 %v150, %v149
    %v154 = vpack.c.b16 %v152, %v151
    %vm157 = vcmask 261120
    %v159 = vsel %vm157, %v125, 0
    %v162 = vsel %vm157, %v126, 0
    %164 = vmatpush.bf16.msra.mxu0 0
    %165 = vmatpush.bf16.msra.mxu0 0
    %166 = vmatpush.bf16.msra.mxu0 0
    %167 = vmatpush.bf16.msra.mxu0 0
    %168 = vmatpush.bf16.msra.mxu0 0
    %169 = vmatpush.bf16.msra.mxu0 0
    %170 = vmatpush.bf16.msra.mxu0 %v154
    %171 = vmatpush.bf16.msra.mxu0 %v153
    %172 = vmatmul.bf16.gmra.mxu0 %v159
    %v173 = vpop.f32.mrf.mxu0
    %v174 = vadd.f32 0.0, %v173
    %v175 = vpop.f32.mrf.mxu0
    %v176 = vadd.f32 0.0, %v175
    %177 = vmatmul.bf16.gmra.mxu0 %v162
    %v178 = vpop.f32.mrf.mxu0
    %v179 = vadd.f32 0.0, %v178
    %v180 = vpop.f32.mrf.mxu0
    %v181 = vadd.f32 0.0, %v180
    %182 = vdwg.mxu0
    %183 = vrot.lane.b32.xlu0 %v153, 96
    %v184 = vpop.permute.xlu0 %183
    %185 = vrot.lane.b32.xlu0 %v154, 96
    %v186 = vpop.permute.xlu0 %185
    %v190 = vsel %vm157, %v127, 0
    %v193 = vsel %vm157, %v128, 0
    %195 = vmatpush.bf16.msra.mxu0 0
    %196 = vmatpush.bf16.msra.mxu0 0
    %197 = vmatpush.bf16.msra.mxu0 0
    %198 = vmatpush.bf16.msra.mxu0 0
    %199 = vmatpush.bf16.msra.mxu0 0
    %200 = vmatpush.bf16.msra.mxu0 0
    %201 = vmatpush.bf16.msra.mxu0 %v186
    %202 = vmatpush.bf16.msra.mxu0 %v184
    %203 = vmatmul.bf16.gmra.mxu0 %v190
    %v204 = vpop.f32.mrf.mxu0
    %v205 = vadd.f32 0.0, %v204
    %v206 = vpop.f32.mrf.mxu0
    %v207 = vadd.f32 0.0, %v206
    %208 = vmatmul.bf16.gmra.mxu0 %v193
    %v209 = vpop.f32.mrf.mxu0
    %v210 = vadd.f32 0.0, %v209
    %v211 = vpop.f32.mrf.mxu0
    %v212 = vadd.f32 0.0, %v211
    %213 = vdwg.mxu0
    %vm214 = vcmp.gt.f32.partialorder %v174, 0.0
    %vm215 = vcmp.gt.f32.partialorder %v176, 0.0
    %vm216 = vcmp.gt.f32.partialorder %v179, 0.0
    %vm217 = vcmp.gt.f32.partialorder %v181, 0.0
    %v218 = vadd.f32 %v174, 1.0
    %v219 = vadd.f32 %v176, 1.0
    %v220 = vadd.f32 %v179, 1.0
    %v221 = vadd.f32 %v181, 1.0
    %v222 = vmul.f32 %v174, 1.442695
    %v223 = vpow.pop %v222
    %v224 = vmul.f32 %v176, 1.442695
    %v225 = vpow.pop %v224
    %v226 = vmul.f32 %v179, 1.442695
    %v227 = vpow.pop %v226
    %v228 = vmul.f32 %v181, 1.442695
    %v229 = vpow.pop %v228
    %v230 = vsel %vm214, %v218, %v223
    %v231 = vsel %vm215, %v219, %v225
    %v232 = vsel %vm216, %v220, %v227
    %v233 = vsel %vm217, %v221, %v229
    %v234 = vpack.c.bf16 %v230, %v230
    %v235 = vpack.c.bf16 %v231, %v231
    %v236 = vpack.c.bf16 %v232, %v232
    %v237 = vpack.c.bf16 %v233, %v233
    %vm238 = vcmp.gt.f32.partialorder %v205, 0.0
    %vm239 = vcmp.gt.f32.partialorder %v207, 0.0
    %vm240 = vcmp.gt.f32.partialorder %v210, 0.0
    %vm241 = vcmp.gt.f32.partialorder %v212, 0.0
    %v242 = vadd.f32 %v205, 1.0
    %v243 = vadd.f32 %v207, 1.0
    %v244 = vadd.f32 %v210, 1.0
    %v245 = vadd.f32 %v212, 1.0
    %v246 = vmul.f32 %v205, 1.442695
    %v247 = vpow.pop %v246
    %v248 = vmul.f32 %v207, 1.442695
    %v249 = vpow.pop %v248
    %v250 = vmul.f32 %v210, 1.442695
    %v251 = vpow.pop %v250
    %v252 = vmul.f32 %v212, 1.442695
    %v253 = vpow.pop %v252
    %v254 = vsel %vm238, %v242, %v247
    %v255 = vsel %vm239, %v243, %v249
    %v256 = vsel %vm240, %v244, %v251
    %v257 = vsel %vm241, %v245, %v253
    %v258 = vpack.c.bf16 %v254, %v254
    %v259 = vpack.c.bf16 %v255, %v255
    %v260 = vpack.c.bf16 %v256, %v256
    %v261 = vpack.c.bf16 %v257, %v257
    %266 = vrot.lane.b32.xlu0 %v205, 96
    %v267 = vpop.permute.xlu0 %266
    %268 = vrot.lane.b32.xlu0 %v207, 96
    %v269 = vpop.permute.xlu0 %268
    %270 = vrot.lane.b32.xlu0 %v210, 96
    %v271 = vpop.permute.xlu0 %270
    %272 = vrot.lane.b32.xlu0 %v212, 96
    %v273 = vpop.permute.xlu0 %272
    %v278 = vsel %vm157, %v267, 1.0
    %v279 = vsel %vm157, %v269, 1.0
    %v280 = vsel %vm157, %v271, 1.0
    %v281 = vsel %vm157, %v273, 1.0
    %v282 = vpack.c.bf16 %v278, %v278
    %v283 = vpack.c.bf16 %v279, %v279
    %v284 = vpack.c.bf16 %v280, %v280
    %v285 = vpack.c.bf16 %v281, %v281
    %v288 = vunpack.c.l.b16 %v258
    %v289 = vunpack.c.l.b16 %v259
    %v290 = vpack.c.b16 %v289, %v288
    %292 = vxpose.xlu0.c.b16.start [1/8] %v290, 128
    %293 = vxpose.xlu0.c.b16.cont [2/8] 0, 128
    %294 = vxpose.xlu0.c.b16.cont [3/8] 0, 128
    %295 = vxpose.xlu0.c.b16.cont [4/8] 0, 128
    %296 = vxpose.xlu0.c.b16.cont [5/8] 0, 128
    %297 = vxpose.xlu0.c.b16.cont [6/8] 0, 128
    %298 = vxpose.xlu0.c.b16.cont [7/8] 0, 128
    %299 = vxpose.xlu0.c.b16.end [8/8] 0, 128
    %v300 = vpop.trf.xlu0
    %v301 = vpop.trf.xlu0
    %v302 = vpop.trf.xlu0
    %v303 = vpop.trf.xlu0
    %v304 = vpop.trf.xlu0
    %v305 = vpop.trf.xlu0
    %v306 = vpop.trf.xlu0
    %v307 = vpop.trf.xlu0
    %v310 = vunpack.c.l.b16 %v282
    %v311 = vunpack.c.l.b16 %v283
    %v312 = vpack.c.b16 %v311, %v310
    %vm314 = vcmask 130048
    %v316 = vsel %vm314, %v300, 0
    %v319 = vsel %vm314, %v301, 0
    %321 = vmatpush.bf16.msra.mxu0 0
    %322 = vmatpush.bf16.msra.mxu0 0
    %323 = vmatpush.bf16.msra.mxu0 0
    %324 = vmatpush.bf16.msra.mxu0 0
    %325 = vmatpush.bf16.msra.mxu0 0
    %326 = vmatpush.bf16.msra.mxu0 0
    %327 = vmatpush.bf16.msra.mxu0 0
    %328 = vmatpush.bf16.msra.mxu0 %v312
    %329 = vmatmul.bf16.gmra.mxu0 %v316
    %v330 = vpop.f32.mrf.mxu0
    %v331 = vadd.f32 0.0, %v330
    %v332 = vpop.f32.mrf.mxu0
    %v333 = vadd.f32 0.0, %v332
    %334 = vmatmul.bf16.gmra.mxu0 %v319
    %v335 = vpop.f32.mrf.mxu0
    %v336 = vadd.f32 0.0, %v335
    %v337 = vpop.f32.mrf.mxu0
    %v338 = vadd.f32 0.0, %v337
    %339 = vdwg.mxu0
    %v340 = vpack.c.bf16 %v331, %v331
    %v341 = vpack.c.bf16 %v333, %v333
    %v342 = vpack.c.bf16 %v336, %v336
    %v343 = vpack.c.bf16 %v338, %v338
    %v344 = vunpack.c.l.bf16 %v340
    %v345 = vunpack.c.l.bf16 %v341
    %v346 = vunpack.c.l.bf16 %v342
    %v347 = vunpack.c.l.bf16 %v343
    %v348 = vunpack.c.l.bf16 %v141
    %v349 = vunpack.c.l.bf16 %v142
    %v350 = vunpack.c.l.bf16 %v143
    %v351 = vunpack.c.l.bf16 %v144
    %v352 = vmul.f32 %v344, %v348
    %v353 = vmul.f32 %v345, %v349
    %v354 = vmul.f32 %v346, %v350
    %v355 = vmul.f32 %v347, %v351
    %v356 = vpack.c.bf16 %v353, %v352
    %v357 = vpack.c.bf16 %v355, %v354
    %v360 = vunpack.c.l.b16 %v234
    %v361 = vunpack.c.l.b16 %v235
    %v362 = vpack.c.b16 %v361, %v360
    %v364 = vsel %vm157, %v362, 0
    %366 = vmatpush.bf16.msra.mxu0 0
    %367 = vmatpush.bf16.msra.mxu0 0
    %368 = vmatpush.bf16.msra.mxu0 0
    %369 = vmatpush.bf16.msra.mxu0 0
    %370 = vmatpush.bf16.msra.mxu0 0
    %371 = vmatpush.bf16.msra.mxu0 0
    %372 = vmatpush.bf16.msra.mxu0 %v357
    %373 = vmatpush.bf16.msra.mxu0 %v356
    %374 = vmatmul.bf16.gmra.mxu0 %v364
    %v375 = vpop.f32.mrf.mxu0
    %v376 = vadd.f32 0.0, %v375
    %v377 = vpop.f32.mrf.mxu0
    %v378 = vadd.f32 0.0, %v377
    %379 = vdwg.mxu0
    %v380 = vadd.f32 %v376, 1e-06
    %v381 = vadd.f32 %v378, 1e-06
    %v382 = vrcp.pop %v380
    %v383 = vrcp.pop %v381
    %386 = vrot.lane.b32.xlu0 %v382, 96
    %v387 = vpop.permute.xlu0 %386
    %388 = vrot.lane.b32.xlu0 %v383, 96
    %v389 = vpop.permute.xlu0 %388
    %v392 = vmul.f32 %v376, %v387
    %v393 = vmul.f32 %v378, %v389
    %v396 = vunpack.c.l.b16 %v260
    %v397 = vunpack.c.l.b16 %v261
    %v398 = vpack.c.b16 %v397, %v396
    %400 = vxpose.xlu0.c.b16.start [1/8] %v398, 128
    %401 = vxpose.xlu0.c.b16.cont [2/8] 0, 128
    %402 = vxpose.xlu0.c.b16.cont [3/8] 0, 128
    %403 = vxpose.xlu0.c.b16.cont [4/8] 0, 128
    %404 = vxpose.xlu0.c.b16.cont [5/8] 0, 128
    %405 = vxpose.xlu0.c.b16.cont [6/8] 0, 128
    %406 = vxpose.xlu0.c.b16.cont [7/8] 0, 128
    %407 = vxpose.xlu0.c.b16.end [8/8] 0, 128
    %v408 = vpop.trf.xlu0
    %v409 = vpop.trf.xlu0
    %v410 = vpop.trf.xlu0
    %v411 = vpop.trf.xlu0
    %v412 = vpop.trf.xlu0
    %v413 = vpop.trf.xlu0
    %v414 = vpop.trf.xlu0
    %v415 = vpop.trf.xlu0
    %v418 = vunpack.c.l.b16 %v284
    %v419 = vunpack.c.l.b16 %v285
    %v420 = vpack.c.b16 %v419, %v418
    %v423 = vsel %vm314, %v408, 0
    %v426 = vsel %vm314, %v409, 0
    %428 = vmatpush.bf16.msra.mxu0 0
    %429 = vmatpush.bf16.msra.mxu0 0
    %430 = vmatpush.bf16.msra.mxu0 0
    %431 = vmatpush.bf16.msra.mxu0 0
    %432 = vmatpush.bf16.msra.mxu0 0
    %433 = vmatpush.bf16.msra.mxu0 0
    %434 = vmatpush.bf16.msra.mxu0 0
    %435 = vmatpush.bf16.msra.mxu0 %v420
    %436 = vmatmul.bf16.gmra.mxu0 %v423
    %v437 = vpop.f32.mrf.mxu0
    %v438 = vadd.f32 0.0, %v437
    %v439 = vpop.f32.mrf.mxu0
    %v440 = vadd.f32 0.0, %v439
    %441 = vmatmul.bf16.gmra.mxu0 %v426
    %v442 = vpop.f32.mrf.mxu0
    %v443 = vadd.f32 0.0, %v442
    %v444 = vpop.f32.mrf.mxu0
    %v445 = vadd.f32 0.0, %v444
    %446 = vdwg.mxu0
    %v447 = vpack.c.bf16 %v438, %v438
    %v448 = vpack.c.bf16 %v440, %v440
    %v449 = vpack.c.bf16 %v443, %v443
    %v450 = vpack.c.bf16 %v445, %v445
    %v451 = vunpack.c.l.bf16 %v447
    %v452 = vunpack.c.l.bf16 %v448
    %v453 = vunpack.c.l.bf16 %v449
    %v454 = vunpack.c.l.bf16 %v450
    %v455 = vmul.f32 %v451, %v348
    %v456 = vmul.f32 %v452, %v349
    %v457 = vmul.f32 %v453, %v350
    %v458 = vmul.f32 %v454, %v351
    %v459 = vpack.c.bf16 %v456, %v455
    %v460 = vpack.c.bf16 %v458, %v457
    %v463 = vunpack.c.l.b16 %v236
    %v464 = vunpack.c.l.b16 %v237
    %v465 = vpack.c.b16 %v464, %v463
    %v467 = vsel %vm157, %v465, 0
    %469 = vmatpush.bf16.msra.mxu0 0
    %470 = vmatpush.bf16.msra.mxu0 0
    %471 = vmatpush.bf16.msra.mxu0 0
    %472 = vmatpush.bf16.msra.mxu0 0
    %473 = vmatpush.bf16.msra.mxu0 0
    %474 = vmatpush.bf16.msra.mxu0 0
    %475 = vmatpush.bf16.msra.mxu0 %v460
    %476 = vmatpush.bf16.msra.mxu0 %v459
    %477 = vmatmul.bf16.gmra.mxu0 %v467
    %v478 = vpop.f32.mrf.mxu0
    %v479 = vadd.f32 0.0, %v478
    %v480 = vpop.f32.mrf.mxu0
    %v481 = vadd.f32 0.0, %v480
    %482 = vdwg.mxu0
    %v483 = vadd.f32 %v479, 1e-06
    %v484 = vadd.f32 %v481, 1e-06
    %v485 = vrcp.pop %v483
    %v486 = vrcp.pop %v484
    %489 = vrot.lane.b32.xlu0 %v485, 96
    %v490 = vpop.permute.xlu0 %489
    %491 = vrot.lane.b32.xlu0 %v486, 96
    %v492 = vpop.permute.xlu0 %491
    %v495 = vmul.f32 %v479, %v490
    %v496 = vmul.f32 %v481, %v492
    %v497 = vpack.c.bf16 %v393, %v392
    %v498 = vpack.c.bf16 %v496, %v495
    %499 = vrot.lane.b32.xlu0 %v153, 32
    %v500 = vpop.permute.xlu0 %499
    %501 = vrot.lane.b32.xlu0 %v154, 32
    %v502 = vpop.permute.xlu0 %501
    %v506 = vsel %vm157, %v497, 0
    %v509 = vsel %vm157, %v498, 0
    %511 = vmatpush.bf16.msra.mxu0 0
    %512 = vmatpush.bf16.msra.mxu0 0
    %513 = vmatpush.bf16.msra.mxu0 0
    %514 = vmatpush.bf16.msra.mxu0 0
    %515 = vmatpush.bf16.msra.mxu0 0
    %516 = vmatpush.bf16.msra.mxu0 0
    %517 = vmatpush.bf16.msra.mxu0 %v502
    %518 = vmatpush.bf16.msra.mxu0 %v500
    %519 = vmatmul.bf16.gmra.mxu0 %v506
    %v520 = vpop.f32.mrf.mxu0
    %v521 = vadd.f32 0.0, %v520
    %v522 = vpop.f32.mrf.mxu0
    %v523 = vadd.f32 0.0, %v522
    %524 = vmatmul.bf16.gmra.mxu0 %v509
    %v525 = vpop.f32.mrf.mxu0
    %v526 = vadd.f32 0.0, %v525
    %v527 = vpop.f32.mrf.mxu0
    %v528 = vadd.f32 0.0, %v527
    %529 = vdwg.mxu0
    %v530 = vld [vmem:[#allocation10] sm:$0x1]
    %v531 = vld [vmem:[#allocation10 + $0x1] sm:$0x1]
    %v532 = vsel %vm157, %v521, 0.0
    %533 = vadd.xlane.f32.xlu0 %v532
    %v534 = vpop.xlane.xlu0 %533
    %v535 = vsel %vm157, %v523, 0.0
    %536 = vadd.xlane.f32.xlu0 %v535
    %v537 = vpop.xlane.xlu0 %536
    %v538 = vsel %vm157, %v526, 0.0
    %539 = vadd.xlane.f32.xlu0 %v538
    %v540 = vpop.xlane.xlu0 %539
    %v541 = vsel %vm157, %v528, 0.0
    %542 = vadd.xlane.f32.xlu0 %v541
    %v543 = vpop.xlane.xlu0 %542
    %v544 = vrcp.pop 32.0
    %v545 = vmul.f32 32.0, %v544
    %v546 = vsub.f32 1.0, %v545
    %v547 = vmul.f32 %v544, %v546
    %v548 = vadd.f32 %v544, %v547
    %vm549 = vweird.f32 %v544
    %v550 = vsel %vm549, %v544, %v548
    %v551 = vmul.f32 %v534, %v550
    %v552 = vmul.f32 %v537, %v550
    %v553 = vmul.f32 %v540, %v550
    %v554 = vmul.f32 %v543, %v550
    %v555 = vsub.f32 %v521, %v551
    %v556 = vsub.f32 %v523, %v552
    %v557 = vsub.f32 %v526, %v553
    %v558 = vsub.f32 %v528, %v554
    %v559 = vmul.f32 %v555, %v555
    %v560 = vmul.f32 %v556, %v556
    %v561 = vmul.f32 %v557, %v557
    %v562 = vmul.f32 %v558, %v558
    %v563 = vsel %vm157, %v559, 0.0
    %564 = vadd.xlane.f32.xlu0 %v563
    %v565 = vpop.xlane.xlu0 %564
    %v566 = vsel %vm157, %v560, 0.0
    %567 = vadd.xlane.f32.xlu0 %v566
    %v568 = vpop.xlane.xlu0 %567
    %v569 = vsel %vm157, %v561, 0.0
    %570 = vadd.xlane.f32.xlu0 %v569
    %v571 = vpop.xlane.xlu0 %570
    %v572 = vsel %vm157, %v562, 0.0
    %573 = vadd.xlane.f32.xlu0 %v572
    %v574 = vpop.xlane.xlu0 %573
    %v575 = vmul.f32 %v565, %v550
    %v576 = vmul.f32 %v568, %v550
    %v577 = vmul.f32 %v571, %v550
    %v578 = vmul.f32 %v574, %v550
    %v579 = vadd.f32 %v575, 1e-05
    %v580 = vadd.f32 %v576, 1e-05
    %v581 = vadd.f32 %v577, 1e-05
    %v582 = vadd.f32 %v578, 1e-05
    %v583 = vrsqrt.pop %v579
    %v584 = vmul.f32 %v583, %v579
    %v585 = vmul.f32 %v584, %v583
    %v586 = vmul.f32 0.5, %v585
    %v587 = vsub.f32 1.5, %v586
    %v588 = vmul.f32 %v583, %v587
    %vm589 = vweird.f32 %v579
    %vm590 = vweird.f32 %v583
    %vm591 = vmor %vm589, %vm590
    %v592 = vsel %vm591, %v583, %v588
    %v593 = vrsqrt.pop %v580
    %v594 = vmul.f32 %v593, %v580
    %v595 = vmul.f32 %v594, %v593
    %v596 = vmul.f32 0.5, %v595
    %v597 = vsub.f32 1.5, %v596
    %v598 = vmul.f32 %v593, %v597
    %vm599 = vweird.f32 %v580
    %vm600 = vweird.f32 %v593
    %vm601 = vmor %vm599, %vm600
    %v602 = vsel %vm601, %v593, %v598
    %v603 = vrsqrt.pop %v581
    %v604 = vmul.f32 %v603, %v581
    %v605 = vmul.f32 %v604, %v603
    %v606 = vmul.f32 0.5, %v605
    %v607 = vsub.f32 1.5, %v606
    %v608 = vmul.f32 %v603, %v607
    %vm609 = vweird.f32 %v581
    %vm610 = vweird.f32 %v603
    %vm611 = vmor %vm609, %vm610
    %v612 = vsel %vm611, %v603, %v608
    %v613 = vrsqrt.pop %v582
    %v614 = vmul.f32 %v613, %v582
    %v615 = vmul.f32 %v614, %v613
    %v616 = vmul.f32 0.5, %v615
    %v617 = vsub.f32 1.5, %v616
    %v618 = vmul.f32 %v613, %v617
    %vm619 = vweird.f32 %v582
    %vm620 = vweird.f32 %v613
    %vm621 = vmor %vm619, %vm620
    %v622 = vsel %vm621, %v613, %v618
    %v623 = vmul.f32 %v555, %v592
    %v624 = vmul.f32 %v556, %v602
    %v625 = vmul.f32 %v557, %v612
    %v626 = vmul.f32 %v558, %v622
    %v627 = vperm.slane %v530, 0
    %v628 = vmul.f32 %v623, %v627
    %v629 = vmul.f32 %v624, %v627
    %v630 = vmul.f32 %v625, %v627
    %v631 = vmul.f32 %v626, %v627
    %v632 = vperm.slane %v531, 0
    %v633 = vadd.f32 %v628, %v632
    %v634 = vadd.f32 %v629, %v632
    %v635 = vadd.f32 %v630, %v632
    %v636 = vadd.f32 %v631, %v632
    %641 = vrot.lane.b32.xlu0 %v633, 32
    %v642 = vpop.permute.xlu0 %641
    %643 = vrot.lane.b32.xlu0 %v634, 32
    %v644 = vpop.permute.xlu0 %643
    %645 = vrot.lane.b32.xlu0 %v635, 32
    %v646 = vpop.permute.xlu0 %645
    %647 = vrot.lane.b32.xlu0 %v636, 32
    %v648 = vpop.permute.xlu0 %647
    %v653 = vsel %vm157, %v117, %v642
    %v654 = vsel %vm157, %v118, %v644
    %v655 = vsel %vm157, %v119, %v646
    %v656 = vsel %vm157, %v120, %v648
    %v657 = vpack.c.bf16 %v654, %v653
    %v658 = vpack.c.bf16 %v656, %v655
    %v667 = vunpack.c.l.b16 %v133
    %v668 = vunpack.c.l.b16 %v134
    %v669 = vunpack.c.l.b16 %v135
    %v670 = vunpack.c.l.b16 %v136
    %v671 = vunpack.c.l.b16 %v137
    %v672 = vunpack.c.l.b16 %v138
    %v673 = vunpack.c.l.b16 %v139
    %v674 = vunpack.c.l.b16 %v140
    %v675 = vpack.c.b16 %v668, %v667
    %v676 = vpack.c.b16 %v670, %v669
    %v677 = vpack.c.b16 %v672, %v671
    %v678 = vpack.c.b16 %v674, %v673
    %vm683 = vcmask 523264
    %v685 = vsel %vm683, %v657, 0
    %v688 = vsel %vm683, %v658, 0
    %690 = vmatpush.bf16.msra.mxu0 0
    %691 = vmatpush.bf16.msra.mxu0 0
    %692 = vmatpush.bf16.msra.mxu0 0
    %693 = vmatpush.bf16.msra.mxu0 0
    %694 = vmatpush.bf16.msra.mxu0 %v678
    %695 = vmatpush.bf16.msra.mxu0 %v677
    %696 = vmatpush.bf16.msra.mxu0 %v676
    %697 = vmatpush.bf16.msra.mxu0 %v675
    %698 = vmatmul.bf16.gmra.mxu0 %v685
    %v699 = vpop.f32.mrf.mxu0
    %v700 = vadd.f32 0.0, %v699
    %v701 = vpop.f32.mrf.mxu0
    %v702 = vadd.f32 0.0, %v701
    %703 = vmatmul.bf16.gmra.mxu0 %v688
    %v704 = vpop.f32.mrf.mxu0
    %v705 = vadd.f32 0.0, %v704
    %v706 = vpop.f32.mrf.mxu0
    %v707 = vadd.f32 0.0, %v706
    %708 = vdwg.mxu0
    %v709 = vmax.f32 %v700, 0.0
    %v710 = vmax.f32 %v702, 0.0
    %v711 = vmax.f32 %v705, 0.0
    %v712 = vmax.f32 %v707, 0.0
    %v713 = vpack.c.bf16 %v710, %v709
    %v714 = vpack.c.bf16 %v712, %v711
    %715 = vrot.lane.b32.xlu0 %v675, 64
    %v716 = vpop.permute.xlu0 %715
    %717 = vrot.lane.b32.xlu0 %v676, 64
    %v718 = vpop.permute.xlu0 %717
    %719 = vrot.lane.b32.xlu0 %v677, 64
    %v720 = vpop.permute.xlu0 %719
    %721 = vrot.lane.b32.xlu0 %v678, 64
    %v722 = vpop.permute.xlu0 %721
    %v728 = vsel %vm683, %v713, 0
    %v731 = vsel %vm683, %v714, 0
    %733 = vmatpush.bf16.msra.mxu0 0
    %734 = vmatpush.bf16.msra.mxu0 0
    %735 = vmatpush.bf16.msra.mxu0 0
    %736 = vmatpush.bf16.msra.mxu0 0
    %737 = vmatpush.bf16.msra.mxu0 %v722
    %738 = vmatpush.bf16.msra.mxu0 %v720
    %739 = vmatpush.bf16.msra.mxu0 %v718
    %740 = vmatpush.bf16.msra.mxu0 %v716
    %741 = vmatmul.bf16.gmra.mxu0 %v728
    %v742 = vpop.f32.mrf.mxu0
    %v743 = vadd.f32 0.0, %v742
    %v744 = vpop.f32.mrf.mxu0
    %v745 = vadd.f32 0.0, %v744
    %746 = vmatmul.bf16.gmra.mxu0 %v731
    %v747 = vpop.f32.mrf.mxu0
    %v748 = vadd.f32 0.0, %v747
    %v749 = vpop.f32.mrf.mxu0
    %v750 = vadd.f32 0.0, %v749
    %751 = vdwg.mxu0
    %v752 = vld [vmem:[#allocation10 + $0x2] sm:$0x1]
    %v753 = vld [vmem:[#allocation10 + $0x3] sm:$0x1]
    %v754 = vsel %vm157, %v743, 0.0
    %755 = vadd.xlane.f32.xlu0 %v754
    %v756 = vpop.xlane.xlu0 %755
    %v757 = vsel %vm157, %v745, 0.0
    %758 = vadd.xlane.f32.xlu0 %v757
    %v759 = vpop.xlane.xlu0 %758
    %v760 = vsel %vm157, %v748, 0.0
    %761 = vadd.xlane.f32.xlu0 %v760
    %v762 = vpop.xlane.xlu0 %761
    %v763 = vsel %vm157, %v750, 0.0
    %764 = vadd.xlane.f32.xlu0 %v763
    %v765 = vpop.xlane.xlu0 %764
    %v766 = vmul.f32 %v756, %v550
    %v767 = vmul.f32 %v759, %v550
    %v768 = vmul.f32 %v762, %v550
    %v769 = vmul.f32 %v765, %v550
    %v770 = vsub.f32 %v743, %v766
    %v771 = vsub.f32 %v745, %v767
    %v772 = vsub.f32 %v748, %v768
    %v773 = vsub.f32 %v750, %v769
    %v774 = vmul.f32 %v770, %v770
    %v775 = vmul.f32 %v771, %v771
    %v776 = vmul.f32 %v772, %v772
    %v777 = vmul.f32 %v773, %v773
    %v778 = vsel %vm157, %v774, 0.0
    %779 = vadd.xlane.f32.xlu0 %v778
    %v780 = vpop.xlane.xlu0 %779
    %v781 = vsel %vm157, %v775, 0.0
    %782 = vadd.xlane.f32.xlu0 %v781
    %v783 = vpop.xlane.xlu0 %782
    %v784 = vsel %vm157, %v776, 0.0
    %785 = vadd.xlane.f32.xlu0 %v784
    %v786 = vpop.xlane.xlu0 %785
    %v787 = vsel %vm157, %v777, 0.0
    %788 = vadd.xlane.f32.xlu0 %v787
    %v789 = vpop.xlane.xlu0 %788
    %v790 = vmul.f32 %v780, %v550
    %v791 = vmul.f32 %v783, %v550
    %v792 = vmul.f32 %v786, %v550
    %v793 = vmul.f32 %v789, %v550
    %v794 = vadd.f32 %v790, 1e-05
    %v795 = vadd.f32 %v791, 1e-05
    %v796 = vadd.f32 %v792, 1e-05
    %v797 = vadd.f32 %v793, 1e-05
    %v798 = vrsqrt.pop %v794
    %v799 = vmul.f32 %v798, %v794
    %v800 = vmul.f32 %v799, %v798
    %v801 = vmul.f32 0.5, %v800
    %v802 = vsub.f32 1.5, %v801
    %v803 = vmul.f32 %v798, %v802
    %vm804 = vweird.f32 %v794
    %vm805 = vweird.f32 %v798
    %vm806 = vmor %vm804, %vm805
    %v807 = vsel %vm806, %v798, %v803
    %v808 = vrsqrt.pop %v795
    %v809 = vmul.f32 %v808, %v795
    %v810 = vmul.f32 %v809, %v808
    %v811 = vmul.f32 0.5, %v810
    %v812 = vsub.f32 1.5, %v811
    %v813 = vmul.f32 %v808, %v812
    %vm814 = vweird.f32 %v795
    %vm815 = vweird.f32 %v808
    %vm816 = vmor %vm814, %vm815
    %v817 = vsel %vm816, %v808, %v813
    %v818 = vrsqrt.pop %v796
    %v819 = vmul.f32 %v818, %v796
    %v820 = vmul.f32 %v819, %v818
    %v821 = vmul.f32 0.5, %v820
    %v822 = vsub.f32 1.5, %v821
    %v823 = vmul.f32 %v818, %v822
    %vm824 = vweird.f32 %v796
    %vm825 = vweird.f32 %v818
    %vm826 = vmor %vm824, %vm825
    %v827 = vsel %vm826, %v818, %v823
    %v828 = vrsqrt.pop %v797
    %v829 = vmul.f32 %v828, %v797
    %v830 = vmul.f32 %v829, %v828
    %v831 = vmul.f32 0.5, %v830
    %v832 = vsub.f32 1.5, %v831
    %v833 = vmul.f32 %v828, %v832
    %vm834 = vweird.f32 %v797
    %vm835 = vweird.f32 %v828
    %vm836 = vmor %vm834, %vm835
    %v837 = vsel %vm836, %v828, %v833
    %v838 = vmul.f32 %v770, %v807
    %v839 = vmul.f32 %v771, %v817
    %v840 = vmul.f32 %v772, %v827
    %v841 = vmul.f32 %v773, %v837
    %v842 = vperm.slane %v752, 0
    %v843 = vmul.f32 %v838, %v842
    %v844 = vmul.f32 %v839, %v842
    %v845 = vmul.f32 %v840, %v842
    %v846 = vmul.f32 %v841, %v842
    %v847 = vperm.slane %v753, 0
    %v848 = vadd.f32 %v843, %v847
    %v849 = vadd.f32 %v844, %v847
    %v850 = vadd.f32 %v845, %v847
    %v851 = vadd.f32 %v846, %v847
    %v852 = vadd.f32 %v117, %v848
    %v853 = vadd.f32 %v118, %v849
    %v854 = vadd.f32 %v119, %v850
    %v855 = vadd.f32 %v120, %v851
    %856 = vst.msk [vmem:[#allocation13] sm:$0xff] %vm157, %v852
    %857 = vst.msk [vmem:[#allocation13 + $0x8] sm:$0xff] %vm157, %v853
    %858 = vst.msk [vmem:[#allocation13 + $0x10] sm:$0xff] %vm157, %v854
    %859 = vst.msk [vmem:[#allocation13 + $0x18] sm:$0xff] %vm157, %v855
    // Predicated region
    $region50: #{tpu_custom_call.1} parent=1 // pred_check
      _
    $region51: #{tpu_custom_call.1} parent=1 // pred_check_branch
      %861 = sbr.rel (0) target = $region53
    $region52: #{tpu_custom_call.1} parent=1 // pred_region
      %863 = vsyncadd [#allocation4], 0
      %s864 = sshll.u32 [#allocation13], 4
      %s865 = int_to_ptr.vmem [resolvable:$true] %s864
      %s866 = sshll.u32 %s6, 4
      %s867 = int_to_ptr.hbm [resolvable:$true] %s866
      %872 = dma.vmem_to_hbm [thread:$0]  %s865, 512, %s867, [#allocation4], 128, 128, 8
    $region53: #{tpu_custom_call.1} parent=1 // pred_fallthru
      _
    // Predicated region
    $region54: #{tpu_custom_call.1} parent=1 // pred_check
      _
    $region55: #{tpu_custom_call.1} parent=1 // pred_check_branch
      %874 = sbr.rel (0) target = $region57
    $region56: #{tpu_custom_call.1} parent=1 // pred_region
      %876 = dma.done [#allocation4], 512
    $region57: #{tpu_custom_call.1} parent=1 // pred_fallthru
      _
    %877 = vsyncpa [#allocation3], 1
    %878 = vsyncpa [#allocation6], 1
    %879 = vsyncpa [#allocation9], 1
    %880 = vsyncpa [#allocation12], 1
    %881 = vsyncpa [#allocation4], 1

</llo_original>
